<compile_context>
chip_gen: v7x
topology: tpu7x:2x2x1
jax: 0.10.0
libtpu: 0.0.40
codegen_flags: <defaults>
</compile_context>

<pallas_src>
import jax
import jax.numpy as jnp
from jax.experimental import pallas as pl
from jax.experimental.pallas import tpu as pltpu


def _round_up(n, m):
    return ((n + m - 1) // m) * m


def alter2_kernel(x_ref, w1_ref, w1t_ref, w2_ref, w2t_ref,
                  b1_ref, b2_ref, b3_ref, br_ref,
                  rec_ref, c2_ref):
    x = x_ref[...]            # (TB, D)
    w1 = w1_ref[...]          # (C0, D)
    w1t = w1t_ref[...]        # (D, C0)
    w2 = w2_ref[...]          # (C1, C0)
    w2t = w2t_ref[...]        # (C0, C1)

    # code1 = sigmoid(x @ W1^T + b1)      -- pre-transposed weight, plain MxK·KxN
    c1 = jax.nn.sigmoid(
        jnp.dot(x, w1t, preferred_element_type=jnp.float32) + b1_ref[...])
    # code2 = sigmoid(code1 @ W2^T + b2)
    c2 = jax.nn.sigmoid(
        jnp.dot(c1, w2t, preferred_element_type=jnp.float32) + b2_ref[...])
    # code3 = sigmoid(code2 @ W2 + b3)
    c3 = jax.nn.sigmoid(
        jnp.dot(c2, w2, preferred_element_type=jnp.float32) + b3_ref[...])
    # recover = code3 @ W1 + b_r
    rec = jnp.dot(c3, w1, preferred_element_type=jnp.float32) + br_ref[...]

    rec_ref[...] = rec.astype(rec_ref.dtype)
    c2_ref[...] = c2.astype(c2_ref.dtype)


def alter2_forward(x, w1, w2, b1, b2, b3, b_r, *, tile_b=1024):
    B, D = x.shape
    C0, _ = w1.shape
    C1, _ = w2.shape

    # --- batch tiling: avoid pathological padding, prefer >=2 grid steps ----
    ntiles = max(1, pl.cdiv(B, tile_b))
    if ntiles == 1 and B >= 16:
        ntiles = 2            # let the "parallel" axis shard across v7x cores
    tb = _round_up(pl.cdiv(B, ntiles), 8)   # multiple of 8 (f32 sublane)
    B_pad = ntiles * tb
    if B_pad != B:
        x = jnp.pad(x, ((0, B_pad - B), (0, 0)))

    # Hoist the transposes once (tiny matrices) so the kernel never relayouts.
    w1t = jnp.transpose(w1)   # (D, C0)
    w2t = jnp.transpose(w2)   # (C0, C1)

    # Biases as (1, N) rows: clean VMEM layout, broadcast over batch in-kernel.
    b1_2d = b1.reshape(1, C0)
    b2_2d = b2.reshape(1, C1)
    b3_2d = b3.reshape(1, C0)
    br_2d = b_r.reshape(1, D)

    grid = (ntiles,)
    # Weights / biases: index_map -> (0, 0) keeps them resident across steps.
    resident = lambda i: (0, 0)

    flops = B_pad * (4 * D * C0 + 4 * C0 * C1)
    transcendentals = B_pad * (2 * C0 + C1)
    bytes_accessed = 4 * (B_pad * (2 * D + C1)
                          + 2 * C0 * D + 2 * C1 * C0
                          + 2 * C0 + C1 + D)

    recover, code2 = pl.pallas_call(
        alter2_kernel,
        out_shape=(
            jax.ShapeDtypeStruct((B_pad, D), jnp.float32),
            jax.ShapeDtypeStruct((B_pad, C1), jnp.float32),
        ),
        grid=grid,
        in_specs=[
            pl.BlockSpec((tb, D), lambda i: (i, 0)),     # x   (tiled on batch)
            pl.BlockSpec((C0, D), resident),             # W1
            pl.BlockSpec((D, C0), resident),             # W1^T
            pl.BlockSpec((C1, C0), resident),            # W2
            pl.BlockSpec((C0, C1), resident),            # W2^T
            pl.BlockSpec((1, C0), resident),             # b1
            pl.BlockSpec((1, C1), resident),             # b2
            pl.BlockSpec((1, C0), resident),             # b3
            pl.BlockSpec((1, D), resident),              # b_r
        ],
        out_specs=(
            pl.BlockSpec((tb, D), lambda i: (i, 0)),     # recover
            pl.BlockSpec((tb, C1), lambda i: (i, 0)),    # code2
        ),
        compiler_params=pltpu.CompilerParams(
            dimension_semantics=("parallel",)),
        cost_estimate=pl.CostEstimate(
            flops=flops,
            transcendentals=transcendentals,
            bytes_accessed=bytes_accessed),
    )(x, w1, w1t, w2, w2t, b1_2d, b2_2d, b3_2d, br_2d)

    if B_pad != B:
        recover = recover[:B]
        code2 = code2[:B]
    return recover, code2


def alter2_reference(x, w1, w2, b1, b2, b3, b_r):
    c1 = jax.nn.sigmoid(x @ w1.T + b1)
    c2 = jax.nn.sigmoid(c1 @ w2.T + b2)
    c3 = jax.nn.sigmoid(c2 @ w2 + b3)
    rec = c3 @ w1 + b_r
    return rec, c2


if __name__ == "__main__":
    dimensionality = 32
    code_sizes = (16, 8)  # (C0, C1); self.code_size = code_sizes[-1]

    key = jax.random.PRNGKey(0)
    k_x, k_w1, k_w2, k_x2 = jax.random.split(key, 4)

    # Deterministic parameter init mirroring the PyTorch __init__:
    # W1, W2 ~ Normal(0, 1); b1, b2, b3, b_r = 0.1
    w1 = jax.random.normal(k_w1, (code_sizes[0], dimensionality),
                           dtype=jnp.float32)
    w2 = jax.random.normal(k_w2, (code_sizes[1], code_sizes[0]),
                           dtype=jnp.float32)
    b1 = jnp.full((code_sizes[0],), 0.1, dtype=jnp.float32)
    b2 = jnp.full((code_sizes[1],), 0.1, dtype=jnp.float32)
    b3 = jnp.full((code_sizes[0],), 0.1, dtype=jnp.float32)
    b_r = jnp.full((dimensionality,), 0.1, dtype=jnp.float32)

    # --- test 1: small batch, single grid step, no padding ------------------
    batch = 8
    x = jax.random.normal(k_x, (batch, dimensionality), dtype=jnp.float32)
    recover, code2 = alter2_forward(x, w1, w2, b1, b2, b3, b_r)
    jax.block_until_ready((recover, code2))

    rec_ref, c2_ref = alter2_reference(x, w1, w2, b1, b2, b3, b_r)
    assert recover.shape == (batch, dimensionality)
    assert code2.shape == (batch, code_sizes[1])
    assert jnp.allclose(recover, rec_ref, atol=1e-4, rtol=1e-4)
    assert jnp.allclose(code2, c2_ref, atol=1e-5, rtol=1e-5)

    # --- test 2: multi-step grid + batch padding path -----------------------
    batch2 = 100
    x2 = jax.random.normal(k_x2, (batch2, dimensionality), dtype=jnp.float32)
    recover2, code2_2 = alter2_forward(x2, w1, w2, b1, b2, b3, b_r, tile_b=32)
    jax.block_until_ready((recover2, code2_2))

    rec_ref2, c2_ref2 = alter2_reference(x2, w1, w2, b1, b2, b3, b_r)
    assert recover2.shape == (batch2, dimensionality)
    assert code2_2.shape == (batch2, code_sizes[1])
    assert jnp.allclose(recover2, rec_ref2, atol=1e-4, rtol=1e-4)
    assert jnp.allclose(code2_2, c2_ref2, atol=1e-5, rtol=1e-5)

    print("KERNEL_OK")
</pallas_src>

<mosaic_0001>
module attributes {stable_mosaic.version = 11 : i64} {
  func.func @alter2_kernel(%arg0: i32, %arg1: memref<8x32xf32, #tpu.memory_space<vmem>>, %arg2: memref<16x32xf32, #tpu.memory_space<vmem>>, %arg3: memref<32x16xf32, #tpu.memory_space<vmem>>, %arg4: memref<8x16xf32, #tpu.memory_space<vmem>>, %arg5: memref<16x8xf32, #tpu.memory_space<vmem>>, %arg6: memref<1x16xf32, #tpu.memory_space<vmem>>, %arg7: memref<1x8xf32, #tpu.memory_space<vmem>>, %arg8: memref<1x16xf32, #tpu.memory_space<vmem>>, %arg9: memref<1x32xf32, #tpu.memory_space<vmem>>, %arg10: memref<8x32xf32, #tpu.memory_space<vmem>>, %arg11: memref<8x8xf32, #tpu.memory_space<vmem>>) attributes {dimension_semantics = [#tpu.dimension_semantics<parallel>], iteration_bounds = array<i64: 1>, scalar_prefetch = 0 : i64, scratch_operands = 0 : i64, tpu.core_type = #tpu.core_type<tc>, window_params = [{transform_indices = @transform_0, window_bounds = array<i64: 8, 32>}, {pipeline_mode = #tpu.pipeline_mode<synchronous>, transform_indices = @transform_1, window_bounds = array<i64: 16, 32>}, {pipeline_mode = #tpu.pipeline_mode<synchronous>, transform_indices = @transform_2, window_bounds = array<i64: 32, 16>}, {pipeline_mode = #tpu.pipeline_mode<synchronous>, transform_indices = @transform_3, window_bounds = array<i64: 8, 16>}, {pipeline_mode = #tpu.pipeline_mode<synchronous>, transform_indices = @transform_4, window_bounds = array<i64: 16, 8>}, {pipeline_mode = #tpu.pipeline_mode<synchronous>, transform_indices = @transform_5, window_bounds = array<i64: 1, 16>}, {pipeline_mode = #tpu.pipeline_mode<synchronous>, transform_indices = @transform_6, window_bounds = array<i64: 1, 8>}, {pipeline_mode = #tpu.pipeline_mode<synchronous>, transform_indices = @transform_7, window_bounds = array<i64: 1, 16>}, {pipeline_mode = #tpu.pipeline_mode<synchronous>, transform_indices = @transform_8, window_bounds = array<i64: 1, 32>}, {transform_indices = @transform_9, window_bounds = array<i64: 8, 32>}, {transform_indices = @transform_10, window_bounds = array<i64: 8, 8>}]} {
    %c0 = arith.constant 0 : index
    %c0_0 = arith.constant 0 : index
    %0 = vector.load %arg1[%c0, %c0_0] : memref<8x32xf32, #tpu.memory_space<vmem>>, vector<8x32xf32>
    %c0_1 = arith.constant 0 : index
    %c0_2 = arith.constant 0 : index
    %1 = vector.load %arg2[%c0_1, %c0_2] : memref<16x32xf32, #tpu.memory_space<vmem>>, vector<16x32xf32>
    %c0_3 = arith.constant 0 : index
    %c0_4 = arith.constant 0 : index
    %2 = vector.load %arg3[%c0_3, %c0_4] : memref<32x16xf32, #tpu.memory_space<vmem>>, vector<32x16xf32>
    %c0_5 = arith.constant 0 : index
    %c0_6 = arith.constant 0 : index
    %3 = vector.load %arg4[%c0_5, %c0_6] : memref<8x16xf32, #tpu.memory_space<vmem>>, vector<8x16xf32>
    %c0_7 = arith.constant 0 : index
    %c0_8 = arith.constant 0 : index
    %4 = vector.load %arg5[%c0_7, %c0_8] : memref<16x8xf32, #tpu.memory_space<vmem>>, vector<16x8xf32>
    %cst = arith.constant dense<0.000000e+00> : vector<8x16xf32>
    %5 = tpu.matmul %0, %2, %cst {dimension_numbers = #tpu.dot_dimension_numbers<[1], [0], [0], [1], [0, 0, 1, 1], [], []>} : vector<8x32xf32>, vector<32x16xf32>, vector<8x16xf32> -> vector<8x16xf32>
    %c0_9 = arith.constant 0 : index
    %c0_10 = arith.constant 0 : index
    %6 = vector.load %arg6[%c0_9, %c0_10] : memref<1x16xf32, #tpu.memory_space<vmem>>, vector<1x16xf32>
    %7 = vector.broadcast %6 : vector<1x16xf32> to vector<8x16xf32>
    %8 = arith.addf %5, %7 : vector<8x16xf32>
    %9 = arith.negf %8 : vector<8x16xf32>
    %10 = math.exp %9 : vector<8x16xf32>
    %cst_11 = arith.constant 1.000000e+00 : f32
    %11 = vector.broadcast %cst_11 : f32 to vector<8x16xf32>
    %12 = arith.addf %11, %10 : vector<8x16xf32>
    %13 = arith.divf %11, %12 : vector<8x16xf32>
    %cst_12 = arith.constant dense<0.000000e+00> : vector<8x8xf32>
    %14 = tpu.matmul %13, %4, %cst_12 {dimension_numbers = #tpu.dot_dimension_numbers<[1], [0], [0], [1], [0, 0, 1, 1], [], []>} : vector<8x16xf32>, vector<16x8xf32>, vector<8x8xf32> -> vector<8x8xf32>
    %c0_13 = arith.constant 0 : index
    %c0_14 = arith.constant 0 : index
    %15 = vector.load %arg7[%c0_13, %c0_14] : memref<1x8xf32, #tpu.memory_space<vmem>>, vector<1x8xf32>
    %16 = vector.broadcast %15 : vector<1x8xf32> to vector<8x8xf32>
    %17 = arith.addf %14, %16 : vector<8x8xf32>
    %18 = arith.negf %17 : vector<8x8xf32>
    %19 = math.exp %18 : vector<8x8xf32>
    %cst_15 = arith.constant 1.000000e+00 : f32
    %20 = vector.broadcast %cst_15 : f32 to vector<8x8xf32>
    %21 = arith.addf %20, %19 : vector<8x8xf32>
    %22 = arith.divf %20, %21 : vector<8x8xf32>
    %cst_16 = arith.constant dense<0.000000e+00> : vector<8x16xf32>
    %23 = tpu.matmul %22, %3, %cst_16 {dimension_numbers = #tpu.dot_dimension_numbers<[1], [0], [0], [1], [0, 0, 1, 1], [], []>} : vector<8x8xf32>, vector<8x16xf32>, vector<8x16xf32> -> vector<8x16xf32>
    %c0_17 = arith.constant 0 : index
    %c0_18 = arith.constant 0 : index
    %24 = vector.load %arg8[%c0_17, %c0_18] : memref<1x16xf32, #tpu.memory_space<vmem>>, vector<1x16xf32>
    %25 = vector.broadcast %24 : vector<1x16xf32> to vector<8x16xf32>
    %26 = arith.addf %23, %25 : vector<8x16xf32>
    %27 = arith.negf %26 : vector<8x16xf32>
    %28 = math.exp %27 : vector<8x16xf32>
    %cst_19 = arith.constant 1.000000e+00 : f32
    %29 = vector.broadcast %cst_19 : f32 to vector<8x16xf32>
    %30 = arith.addf %29, %28 : vector<8x16xf32>
    %31 = arith.divf %29, %30 : vector<8x16xf32>
    %cst_20 = arith.constant dense<0.000000e+00> : vector<8x32xf32>
    %32 = tpu.matmul %31, %1, %cst_20 {dimension_numbers = #tpu.dot_dimension_numbers<[1], [0], [0], [1], [0, 0, 1, 1], [], []>} : vector<8x16xf32>, vector<16x32xf32>, vector<8x32xf32> -> vector<8x32xf32>
    %c0_21 = arith.constant 0 : index
    %c0_22 = arith.constant 0 : index
    %33 = vector.load %arg9[%c0_21, %c0_22] : memref<1x32xf32, #tpu.memory_space<vmem>>, vector<1x32xf32>
    %34 = vector.broadcast %33 : vector<1x32xf32> to vector<8x32xf32>
    %35 = arith.addf %32, %34 : vector<8x32xf32>
    %c0_23 = arith.constant 0 : index
    %c0_24 = arith.constant 0 : index
    %36 = vector.load %arg10[%c0_23, %c0_24] : memref<8x32xf32, #tpu.memory_space<vmem>>, vector<8x32xf32>
    tpu.vector_store %arg10[%c0_23, %c0_24], %35 {strides = array<i32>} : memref<8x32xf32, #tpu.memory_space<vmem>>, vector<8x32xf32>,
    %c0_25 = arith.constant 0 : index
    %c0_26 = arith.constant 0 : index
    %37 = vector.load %arg11[%c0_25, %c0_26] : memref<8x8xf32, #tpu.memory_space<vmem>>, vector<8x8xf32>
    tpu.vector_store %arg11[%c0_25, %c0_26], %22 {strides = array<i32>} : memref<8x8xf32, #tpu.memory_space<vmem>>, vector<8x8xf32>,
    return
  }
  func.func @transform_0(%arg0: i32) -> (i32, i32) {
    %c0_i32 = arith.constant 0 : i32
    %c0_i32_0 = arith.constant 0 : i32
    return %arg0, %c0_i32 : i32, i32
  }
  func.func @transform_1(%arg0: i32) -> (i32, i32) {
    %c0_i32 = arith.constant 0 : i32
    %c0_i32_0 = arith.constant 0 : i32
    %c0_i32_1 = arith.constant 0 : i32
    return %c0_i32, %c0_i32_0 : i32, i32
  }
  func.func @transform_2(%arg0: i32) -> (i32, i32) {
    %c0_i32 = arith.constant 0 : i32
    %c0_i32_0 = arith.constant 0 : i32
    %c0_i32_1 = arith.constant 0 : i32
    return %c0_i32, %c0_i32_0 : i32, i32
  }
  func.func @transform_3(%arg0: i32) -> (i32, i32) {
    %c0_i32 = arith.constant 0 : i32
    %c0_i32_0 = arith.constant 0 : i32
    %c0_i32_1 = arith.constant 0 : i32
    return %c0_i32, %c0_i32_0 : i32, i32
  }
  func.func @transform_4(%arg0: i32) -> (i32, i32) {
    %c0_i32 = arith.constant 0 : i32
    %c0_i32_0 = arith.constant 0 : i32
    %c0_i32_1 = arith.constant 0 : i32
    return %c0_i32, %c0_i32_0 : i32, i32
  }
  func.func @transform_5(%arg0: i32) -> (i32, i32) {
    %c0_i32 = arith.constant 0 : i32
    %c0_i32_0 = arith.constant 0 : i32
    %c0_i32_1 = arith.constant 0 : i32
    return %c0_i32, %c0_i32_0 : i32, i32
  }
  func.func @transform_6(%arg0: i32) -> (i32, i32) {
    %c0_i32 = arith.constant 0 : i32
    %c0_i32_0 = arith.constant 0 : i32
    %c0_i32_1 = arith.constant 0 : i32
    return %c0_i32, %c0_i32_0 : i32, i32
  }
  func.func @transform_7(%arg0: i32) -> (i32, i32) {
    %c0_i32 = arith.constant 0 : i32
    %c0_i32_0 = arith.constant 0 : i32
    %c0_i32_1 = arith.constant 0 : i32
    return %c0_i32, %c0_i32_0 : i32, i32
  }
  func.func @transform_8(%arg0: i32) -> (i32, i32) {
    %c0_i32 = arith.constant 0 : i32
    %c0_i32_0 = arith.constant 0 : i32
    %c0_i32_1 = arith.constant 0 : i32
    return %c0_i32, %c0_i32_0 : i32, i32
  }
  func.func @transform_9(%arg0: i32) -> (i32, i32) {
    %c0_i32 = arith.constant 0 : i32
    %c0_i32_0 = arith.constant 0 : i32
    return %arg0, %c0_i32 : i32, i32
  }
  func.func @transform_10(%arg0: i32) -> (i32, i32) {
    %c0_i32 = arith.constant 0 : i32
    %c0_i32_0 = arith.constant 0 : i32
    return %arg0, %c0_i32 : i32, i32
  }
}

</mosaic_0001>

<llo_original>
// kernel: tpu_custom_call.1
$region0: #{tpu_custom_call.1}
  #allocation0 [shape = 'u32[]', space=smem, size = 0x4, offset = 0x4, fixed_abs, tag = 'smem constant byte address 0x4 - core index']
  #allocation1 [shape = 'u32[144,128]{1,0:T(1,128)}', space=vmem, size = 0x12000, scoped, tag = 'internal scratch']
  %s0 = inlined_call_operand.vmem [shape: f32[8,32], index: 0, kind: input, shape index: {}]
  %s1 = inlined_call_operand.vmem [shape: f32[16,32], index: 1, kind: input, shape index: {}]
  %s2 = inlined_call_operand.vmem [shape: f32[32,16], index: 2, kind: input, shape index: {}]
  %s3 = inlined_call_operand.vmem [shape: f32[8,16], index: 3, kind: input, shape index: {}]
  %s4 = inlined_call_operand.vmem [shape: f32[16,8], index: 4, kind: input, shape index: {}]
  %s5 = inlined_call_operand.vmem [shape: f32[1,16], index: 5, kind: input, shape index: {}]
  %s6 = inlined_call_operand.vmem [shape: f32[1,8], index: 6, kind: input, shape index: {}]
  %s7 = inlined_call_operand.vmem [shape: f32[1,16], index: 7, kind: input, shape index: {}]
  %s8 = inlined_call_operand.vmem [shape: f32[1,32], index: 8, kind: input, shape index: {}]
  %s9 = inlined_call_operand.hbm [shape: f32[8,32], index: 9, kind: output, shape index: {0}]
  %s10 = inlined_call_operand.hbm [shape: f32[8,8], index: 10, kind: output, shape index: {1}]
  %11 = xla_tuple %s9, %s10
  %s12 = sld [smem:[#allocation0]]
  $region54: #{tpu_custom_call.1} parent=0
    _
  %s14 = ssub.s32 1, %s12
  %s15 = scalar_select 0, %s14, %s12
  $region1: #{tpu_custom_call.1} parent=0
    #allocation2 [shape = 'u8[4096]{0}', space=vmem, size = 0x1000, scoped, tag = 'output window, operand 0, single buffered']
    #allocation3 [shape = 's32[1]{0}', space=sflag, size = 0x4, scoped, tag = 'scoped memory for tpu_custom_call.1']
    #allocation4 [shape = 'u8[4096]{0}', space=vmem, size = 0x1000, scoped, tag = 'output window, operand 1, single buffered']
    #allocation5 [shape = 's32[1]{0}', space=sflag, size = 0x4, scoped, tag = 'scoped memory for tpu_custom_call.1']
    %16 = vsyncpa [#allocation3], 0
    %17 = vsyncpa [#allocation5], 0
    // Predicated region
    $region2: #{tpu_custom_call.1} parent=1 // pred_check
      _
    $region3: #{tpu_custom_call.1} parent=1 // pred_check_branch
      %19 = sbr.rel (0) target = $region5
    $region4: #{tpu_custom_call.1} parent=1 // pred_region
      _
    $region5: #{tpu_custom_call.1} parent=1 // pred_fallthru
      _
    // Predicated region
    $region6: #{tpu_custom_call.1} parent=1 // pred_check
      _
    $region7: #{tpu_custom_call.1} parent=1 // pred_check_branch
      %21 = sbr.rel (0) target = $region9
    $region8: #{tpu_custom_call.1} parent=1 // pred_region
      _
    $region9: #{tpu_custom_call.1} parent=1 // pred_fallthru
      _
    // Predicated region
    $region10: #{tpu_custom_call.1} parent=1 // pred_check
      _
    $region11: #{tpu_custom_call.1} parent=1 // pred_check_branch
      %23 = sbr.rel (0) target = $region13
    $region12: #{tpu_custom_call.1} parent=1 // pred_region
      _
    $region13: #{tpu_custom_call.1} parent=1 // pred_fallthru
      _
    // Predicated region
    $region14: #{tpu_custom_call.1} parent=1 // pred_check
      _
    $region15: #{tpu_custom_call.1} parent=1 // pred_check_branch
      %25 = sbr.rel (0) target = $region17
    $region16: #{tpu_custom_call.1} parent=1 // pred_region
      _
    $region17: #{tpu_custom_call.1} parent=1 // pred_fallthru
      _
    // Predicated region
    $region18: #{tpu_custom_call.1} parent=1 // pred_check
      _
    $region19: #{tpu_custom_call.1} parent=1 // pred_check_branch
      %27 = sbr.rel (0) target = $region21
    $region20: #{tpu_custom_call.1} parent=1 // pred_region
      _
    $region21: #{tpu_custom_call.1} parent=1 // pred_fallthru
      _
    // Predicated region
    $region22: #{tpu_custom_call.1} parent=1 // pred_check
      _
    $region23: #{tpu_custom_call.1} parent=1 // pred_check_branch
      %29 = sbr.rel (0) target = $region25
    $region24: #{tpu_custom_call.1} parent=1 // pred_region
      _
    $region25: #{tpu_custom_call.1} parent=1 // pred_fallthru
      _
    // Predicated region
    $region26: #{tpu_custom_call.1} parent=1 // pred_check
      _
    $region27: #{tpu_custom_call.1} parent=1 // pred_check_branch
      %31 = sbr.rel (0) target = $region29
    $region28: #{tpu_custom_call.1} parent=1 // pred_region
      _
    $region29: #{tpu_custom_call.1} parent=1 // pred_fallthru
      _
    // Predicated region
    $region30: #{tpu_custom_call.1} parent=1 // pred_check
      _
    $region31: #{tpu_custom_call.1} parent=1 // pred_check_branch
      %33 = sbr.rel (0) target = $region33
    $region32: #{tpu_custom_call.1} parent=1 // pred_region
      _
    $region33: #{tpu_custom_call.1} parent=1 // pred_fallthru
      _
    // Predicated region
    $region34: #{tpu_custom_call.1} parent=1 // pred_check
      _
    $region35: #{tpu_custom_call.1} parent=1 // pred_check_branch
      %35 = sbr.rel (0) target = $region37
    $region36: #{tpu_custom_call.1} parent=1 // pred_region
      _
    $region37: #{tpu_custom_call.1} parent=1 // pred_fallthru
      _
    %v36 = vld [vmem:[%s0] sm:$0xff]
    %v37 = vld [vmem:[%s1] sm:$0xff]
    %v38 = vld [vmem:[%s1 + $0x8] sm:$0xff]
    %v39 = vld [vmem:[%s2] sm:$0xff]
    %v40 = vld [vmem:[%s2 + $0x8] sm:$0xff]
    %v41 = vld [vmem:[%s2 + $0x10] sm:$0xff]
    %v42 = vld [vmem:[%s2 + $0x18] sm:$0xff]
    %v43 = vld [vmem:[%s3] sm:$0xff]
    %v44 = vld [vmem:[%s4] sm:$0xff]
    %v45 = vld [vmem:[%s4 + $0x8] sm:$0xff]
    %v46 = vld [vmem:[%s5] sm:$0x1]
    %v48 = vlaneseq
    %v49 = vshrl.u32 %v48, 7
    %v50 = vsub.s32 0, %v49
    %v51 = vrot.slane %v46, %v50
    %vm53 = vcmask 261120
    %v55 = vsel %vm53, %v36, 0
    %57 = vmatprep.subr.mxu0 0.0
    %58 = vmatpush1.msra.mxu0 %v39
    %59 = vmatprep.subr.mxu0 0.0
    %60 = vmatpush1.msra.mxu0 %v40
    %61 = vmatprep.subr.mxu0 0.0
    %62 = vmatpush1.msra.mxu0 %v41
    %63 = vmatprep.subr.mxu0 0.0
    %64 = vmatpush1.msra.mxu0 %v42
    %65 = vmatprep.subr.mxu0 0.0
    %66 = vmatpush1.msra.mxu0 0.0
    %67 = vmatprep.subr.mxu0 0.0
    %68 = vmatpush1.msra.mxu0 0.0
    %69 = vmatprep.subr.mxu0 0.0
    %70 = vmatpush1.msra.mxu0 0.0
    %71 = vmatprep.subr.mxu0 0.0
    %72 = vmatpush1.msra.mxu0 0.0
    %73 = vmatprep.subr.mxu0 0.0
    %74 = vmatpush1.msra.mxu0 0.0
    %75 = vmatprep.subr.mxu0 0.0
    %76 = vmatpush1.msra.mxu0 0.0
    %77 = vmatprep.subr.mxu0 0.0
    %78 = vmatpush1.msra.mxu0 0.0
    %79 = vmatprep.subr.mxu0 0.0
    %80 = vmatpush1.msra.mxu0 0.0
    %81 = vmatprep.subr.mxu0 0.0
    %82 = vmatpush1.msra.mxu0 0.0
    %83 = vmatprep.subr.mxu0 0.0
    %84 = vmatpush1.msra.mxu0 0.0
    %85 = vmatprep.subr.mxu0 0.0
    %86 = vmatpush1.msra.mxu0 0.0
    %87 = vmatprep.subr.mxu0 0.0
    %88 = vmatpush1.msra.mxu0 0.0
    %89 = vmatprep.subr.mxu0 0.0
    %90 = vmatpush1.msra.mxu0 0.0
    %91 = vmatprep.subr.mxu0 0.0
    %92 = vmatpush1.msra.mxu0 0.0
    %93 = vmatprep.subr.mxu0 0.0
    %94 = vmatpush1.msra.mxu0 0.0
    %95 = vmatprep.subr.mxu0 0.0
    %96 = vmatpush1.msra.mxu0 0.0
    %97 = vmatprep.subr.mxu0 0.0
    %98 = vmatpush1.msra.mxu0 0.0
    %99 = vmatprep.subr.mxu0 0.0
    %100 = vmatpush1.msra.mxu0 0.0
    %101 = vmatprep.subr.mxu0 0.0
    %102 = vmatpush1.msra.mxu0 0.0
    %103 = vmatprep.subr.mxu0 0.0
    %104 = vmatpush1.msra.mxu0 0.0
    %105 = vmatprep.subr.mxu0 0.0
    %106 = vmatpush1.msra.mxu0 0.0
    %107 = vmatprep.subr.mxu0 0.0
    %108 = vmatpush1.msra.mxu0 0.0
    %109 = vmatprep.subr.mxu0 0.0
    %110 = vmatpush1.msra.mxu0 0.0
    %111 = vmatprep.subr.mxu0 0.0
    %112 = vmatpush1.msra.mxu0 0.0
    %113 = vmatprep.subr.mxu0 0.0
    %114 = vmatpush1.msra.mxu0 0.0
    %115 = vmatprep.subr.mxu0 0.0
    %116 = vmatpush1.msra.mxu0 0.0
    %117 = vmatprep.subr.mxu0 0.0
    %118 = vmatpush1.msra.mxu0 0.0
    %119 = vmatprep.subr.mxu0 0.0
    %120 = vmatpush1.msra.mxu0 0.0
    %121 = vmatprep.mubr.f32.mxu0 0.0
    %122 = vmatmul.mubr.f32.gmra.mrb[0].mxu0 %v55
    %v123 = vpop.f32.mrb[0].mxu0
    %v124 = vadd.f32 %v51, %v123
    %v125 = vpop.f32.mrb[0].mxu0
    %126 = vdwg.mxu0
    %v127 = vxor.u32 %v124, 2147483648
    %v128 = vmul.f32 %v127, 1.442695
    %v129 = vpow.pop %v128
    %v130 = vadd.f32 %v129, 1.0
    %v131 = vrcp.pop %v130
    %v132 = vmul.f32 1.0, %v131
    %v133 = vld [vmem:[%s6] sm:$0x1]
    %v135 = vlaneseq
    %v136 = vshrl.u32 %v135, 7
    %v137 = vsub.s32 0, %v136
    %v138 = vrot.slane %v133, %v137
    %vm140 = vcmask 130048
    %v142 = vsel %vm140, %v132, 0
    %144 = vmatprep.subr.mxu0 0.0
    %145 = vmatpush1.msra.mxu0 %v44
    %146 = vmatprep.subr.mxu0 0.0
    %147 = vmatpush1.msra.mxu0 %v45
    %148 = vmatprep.subr.mxu0 0.0
    %149 = vmatpush1.msra.mxu0 0.0
    %150 = vmatprep.subr.mxu0 0.0
    %151 = vmatpush1.msra.mxu0 0.0
    %152 = vmatprep.subr.mxu0 0.0
    %153 = vmatpush1.msra.mxu0 0.0
    %154 = vmatprep.subr.mxu0 0.0
    %155 = vmatpush1.msra.mxu0 0.0
    %156 = vmatprep.subr.mxu0 0.0
    %157 = vmatpush1.msra.mxu0 0.0
    %158 = vmatprep.subr.mxu0 0.0
    %159 = vmatpush1.msra.mxu0 0.0
    %160 = vmatprep.subr.mxu0 0.0
    %161 = vmatpush1.msra.mxu0 0.0
    %162 = vmatprep.subr.mxu0 0.0
    %163 = vmatpush1.msra.mxu0 0.0
    %164 = vmatprep.subr.mxu0 0.0
    %165 = vmatpush1.msra.mxu0 0.0
    %166 = vmatprep.subr.mxu0 0.0
    %167 = vmatpush1.msra.mxu0 0.0
    %168 = vmatprep.subr.mxu0 0.0
    %169 = vmatpush1.msra.mxu0 0.0
    %170 = vmatprep.subr.mxu0 0.0
    %171 = vmatpush1.msra.mxu0 0.0
    %172 = vmatprep.subr.mxu0 0.0
    %173 = vmatpush1.msra.mxu0 0.0
    %174 = vmatprep.subr.mxu0 0.0
    %175 = vmatpush1.msra.mxu0 0.0
    %176 = vmatprep.subr.mxu0 0.0
    %177 = vmatpush1.msra.mxu0 0.0
    %178 = vmatprep.subr.mxu0 0.0
    %179 = vmatpush1.msra.mxu0 0.0
    %180 = vmatprep.subr.mxu0 0.0
    %181 = vmatpush1.msra.mxu0 0.0
    %182 = vmatprep.subr.mxu0 0.0
    %183 = vmatpush1.msra.mxu0 0.0
    %184 = vmatprep.subr.mxu0 0.0
    %185 = vmatpush1.msra.mxu0 0.0
    %186 = vmatprep.subr.mxu0 0.0
    %187 = vmatpush1.msra.mxu0 0.0
    %188 = vmatprep.subr.mxu0 0.0
    %189 = vmatpush1.msra.mxu0 0.0
    %190 = vmatprep.subr.mxu0 0.0
    %191 = vmatpush1.msra.mxu0 0.0
    %192 = vmatprep.subr.mxu0 0.0
    %193 = vmatpush1.msra.mxu0 0.0
    %194 = vmatprep.subr.mxu0 0.0
    %195 = vmatpush1.msra.mxu0 0.0
    %196 = vmatprep.subr.mxu0 0.0
    %197 = vmatpush1.msra.mxu0 0.0
    %198 = vmatprep.subr.mxu0 0.0
    %199 = vmatpush1.msra.mxu0 0.0
    %200 = vmatprep.subr.mxu0 0.0
    %201 = vmatpush1.msra.mxu0 0.0
    %202 = vmatprep.subr.mxu0 0.0
    %203 = vmatpush1.msra.mxu0 0.0
    %204 = vmatprep.subr.mxu0 0.0
    %205 = vmatpush1.msra.mxu0 0.0
    %206 = vmatprep.subr.mxu0 0.0
    %207 = vmatpush1.msra.mxu0 0.0
    %208 = vmatprep.mubr.f32.mxu0 0.0
    %209 = vmatmul.mubr.f32.gmra.mrb[0].mxu0 %v142
    %v210 = vpop.f32.mrb[0].mxu0
    %v211 = vadd.f32 %v138, %v210
    %v212 = vpop.f32.mrb[0].mxu0
    %213 = vdwg.mxu0
    %v214 = vxor.u32 %v211, 2147483648
    %v215 = vmul.f32 %v214, 1.442695
    %v216 = vpow.pop %v215
    %v217 = vadd.f32 %v216, 1.0
    %v218 = vrcp.pop %v217
    %v219 = vmul.f32 1.0, %v218
    %v220 = vld [vmem:[%s7] sm:$0x1]
    %v222 = vlaneseq
    %v223 = vshrl.u32 %v222, 7
    %v224 = vsub.s32 0, %v223
    %v225 = vrot.slane %v220, %v224
    %vm227 = vcmask 64512
    %v229 = vsel %vm227, %v219, 0
    %231 = vmatprep.subr.mxu0 0.0
    %232 = vmatpush1.msra.mxu0 %v43
    %233 = vmatprep.subr.mxu0 0.0
    %234 = vmatpush1.msra.mxu0 0.0
    %235 = vmatprep.subr.mxu0 0.0
    %236 = vmatpush1.msra.mxu0 0.0
    %237 = vmatprep.subr.mxu0 0.0
    %238 = vmatpush1.msra.mxu0 0.0
    %239 = vmatprep.subr.mxu0 0.0
    %240 = vmatpush1.msra.mxu0 0.0
    %241 = vmatprep.subr.mxu0 0.0
    %242 = vmatpush1.msra.mxu0 0.0
    %243 = vmatprep.subr.mxu0 0.0
    %244 = vmatpush1.msra.mxu0 0.0
    %245 = vmatprep.subr.mxu0 0.0
    %246 = vmatpush1.msra.mxu0 0.0
    %247 = vmatprep.subr.mxu0 0.0
    %248 = vmatpush1.msra.mxu0 0.0
    %249 = vmatprep.subr.mxu0 0.0
    %250 = vmatpush1.msra.mxu0 0.0
    %251 = vmatprep.subr.mxu0 0.0
    %252 = vmatpush1.msra.mxu0 0.0
    %253 = vmatprep.subr.mxu0 0.0
    %254 = vmatpush1.msra.mxu0 0.0
    %255 = vmatprep.subr.mxu0 0.0
    %256 = vmatpush1.msra.mxu0 0.0
    %257 = vmatprep.subr.mxu0 0.0
    %258 = vmatpush1.msra.mxu0 0.0
    %259 = vmatprep.subr.mxu0 0.0
    %260 = vmatpush1.msra.mxu0 0.0
    %261 = vmatprep.subr.mxu0 0.0
    %262 = vmatpush1.msra.mxu0 0.0
    %263 = vmatprep.subr.mxu0 0.0
    %264 = vmatpush1.msra.mxu0 0.0
    %265 = vmatprep.subr.mxu0 0.0
    %266 = vmatpush1.msra.mxu0 0.0
    %267 = vmatprep.subr.mxu0 0.0
    %268 = vmatpush1.msra.mxu0 0.0
    %269 = vmatprep.subr.mxu0 0.0
    %270 = vmatpush1.msra.mxu0 0.0
    %271 = vmatprep.subr.mxu0 0.0
    %272 = vmatpush1.msra.mxu0 0.0
    %273 = vmatprep.subr.mxu0 0.0
    %274 = vmatpush1.msra.mxu0 0.0
    %275 = vmatprep.subr.mxu0 0.0
    %276 = vmatpush1.msra.mxu0 0.0
    %277 = vmatprep.subr.mxu0 0.0
    %278 = vmatpush1.msra.mxu0 0.0
    %279 = vmatprep.subr.mxu0 0.0
    %280 = vmatpush1.msra.mxu0 0.0
    %281 = vmatprep.subr.mxu0 0.0
    %282 = vmatpush1.msra.mxu0 0.0
    %283 = vmatprep.subr.mxu0 0.0
    %284 = vmatpush1.msra.mxu0 0.0
    %285 = vmatprep.subr.mxu0 0.0
    %286 = vmatpush1.msra.mxu0 0.0
    %287 = vmatprep.subr.mxu0 0.0
    %288 = vmatpush1.msra.mxu0 0.0
    %289 = vmatprep.subr.mxu0 0.0
    %290 = vmatpush1.msra.mxu0 0.0
    %291 = vmatprep.subr.mxu0 0.0
    %292 = vmatpush1.msra.mxu0 0.0
    %293 = vmatprep.subr.mxu0 0.0
    %294 = vmatpush1.msra.mxu0 0.0
    %295 = vmatprep.mubr.f32.mxu0 0.0
    %296 = vmatmul.mubr.f32.gmra.mrb[0].mxu0 %v229
    %v297 = vpop.f32.mrb[0].mxu0
    %v298 = vadd.f32 %v225, %v297
    %v299 = vpop.f32.mrb[0].mxu0
    %300 = vdwg.mxu0
    %v301 = vxor.u32 %v298, 2147483648
    %v302 = vmul.f32 %v301, 1.442695
    %v303 = vpow.pop %v302
    %v304 = vadd.f32 %v303, 1.0
    %v305 = vrcp.pop %v304
    %v306 = vmul.f32 1.0, %v305
    %v307 = vld [vmem:[%s8] sm:$0x1]
    %v309 = vlaneseq
    %v310 = vshrl.u32 %v309, 7
    %v311 = vsub.s32 0, %v310
    %v312 = vrot.slane %v307, %v311
    %v315 = vsel %vm140, %v306, 0
    %317 = vmatprep.subr.mxu0 0.0
    %318 = vmatpush1.msra.mxu0 %v37
    %319 = vmatprep.subr.mxu0 0.0
    %320 = vmatpush1.msra.mxu0 %v38
    %321 = vmatprep.subr.mxu0 0.0
    %322 = vmatpush1.msra.mxu0 0.0
    %323 = vmatprep.subr.mxu0 0.0
    %324 = vmatpush1.msra.mxu0 0.0
    %325 = vmatprep.subr.mxu0 0.0
    %326 = vmatpush1.msra.mxu0 0.0
    %327 = vmatprep.subr.mxu0 0.0
    %328 = vmatpush1.msra.mxu0 0.0
    %329 = vmatprep.subr.mxu0 0.0
    %330 = vmatpush1.msra.mxu0 0.0
    %331 = vmatprep.subr.mxu0 0.0
    %332 = vmatpush1.msra.mxu0 0.0
    %333 = vmatprep.subr.mxu0 0.0
    %334 = vmatpush1.msra.mxu0 0.0
    %335 = vmatprep.subr.mxu0 0.0
    %336 = vmatpush1.msra.mxu0 0.0
    %337 = vmatprep.subr.mxu0 0.0
    %338 = vmatpush1.msra.mxu0 0.0
    %339 = vmatprep.subr.mxu0 0.0
    %340 = vmatpush1.msra.mxu0 0.0
    %341 = vmatprep.subr.mxu0 0.0
    %342 = vmatpush1.msra.mxu0 0.0
    %343 = vmatprep.subr.mxu0 0.0
    %344 = vmatpush1.msra.mxu0 0.0
    %345 = vmatprep.subr.mxu0 0.0
    %346 = vmatpush1.msra.mxu0 0.0
    %347 = vmatprep.subr.mxu0 0.0
    %348 = vmatpush1.msra.mxu0 0.0
    %349 = vmatprep.subr.mxu0 0.0
    %350 = vmatpush1.msra.mxu0 0.0
    %351 = vmatprep.subr.mxu0 0.0
    %352 = vmatpush1.msra.mxu0 0.0
    %353 = vmatprep.subr.mxu0 0.0
    %354 = vmatpush1.msra.mxu0 0.0
    %355 = vmatprep.subr.mxu0 0.0
    %356 = vmatpush1.msra.mxu0 0.0
    %357 = vmatprep.subr.mxu0 0.0
    %358 = vmatpush1.msra.mxu0 0.0
    %359 = vmatprep.subr.mxu0 0.0
    %360 = vmatpush1.msra.mxu0 0.0
    %361 = vmatprep.subr.mxu0 0.0
    %362 = vmatpush1.msra.mxu0 0.0
    %363 = vmatprep.subr.mxu0 0.0
    %364 = vmatpush1.msra.mxu0 0.0
    %365 = vmatprep.subr.mxu0 0.0
    %366 = vmatpush1.msra.mxu0 0.0
    %367 = vmatprep.subr.mxu0 0.0
    %368 = vmatpush1.msra.mxu0 0.0
    %369 = vmatprep.subr.mxu0 0.0
    %370 = vmatpush1.msra.mxu0 0.0
    %371 = vmatprep.subr.mxu0 0.0
    %372 = vmatpush1.msra.mxu0 0.0
    %373 = vmatprep.subr.mxu0 0.0
    %374 = vmatpush1.msra.mxu0 0.0
    %375 = vmatprep.subr.mxu0 0.0
    %376 = vmatpush1.msra.mxu0 0.0
    %377 = vmatprep.subr.mxu0 0.0
    %378 = vmatpush1.msra.mxu0 0.0
    %379 = vmatprep.subr.mxu0 0.0
    %380 = vmatpush1.msra.mxu0 0.0
    %381 = vmatprep.mubr.f32.mxu0 0.0
    %382 = vmatmul.mubr.f32.gmra.mrb[0].mxu0 %v315
    %v383 = vpop.f32.mrb[0].mxu0
    %v384 = vadd.f32 %v312, %v383
    %v385 = vpop.f32.mrb[0].mxu0
    %386 = vdwg.mxu0
    %387 = vst.msk [vmem:[#allocation2] sm:$0xff] %vm53, %v384
    %388 = vst.msk [vmem:[#allocation4] sm:$0xff] %vm227, %v219
    // Predicated region
    $region38: #{tpu_custom_call.1} parent=1 // pred_check
      _
    $region39: #{tpu_custom_call.1} parent=1 // pred_check_branch
      %390 = sbr.rel (0) target = $region41
    $region40: #{tpu_custom_call.1} parent=1 // pred_region
      %s392 = ssub.s32 128, 128
      %393 = vsyncadd [#allocation3], %s392
      %s395 = sshll.u32 [#allocation2], 4
      %s396 = int_to_ptr.vmem [resolvable:$true] %s395
      %398 = dma.vmem_to_hbm [thread:$0]  %s396, 128, %s9, [#allocation3]
    $region41: #{tpu_custom_call.1} parent=1 // pred_fallthru
      _
    // Predicated region
    $region42: #{tpu_custom_call.1} parent=1 // pred_check
      _
    $region43: #{tpu_custom_call.1} parent=1 // pred_check_branch
      %400 = sbr.rel (0) target = $region45
    $region44: #{tpu_custom_call.1} parent=1 // pred_region
      %s402 = ssub.s32 128, 128
      %403 = vsyncadd [#allocation5], %s402
      %s405 = sshll.u32 [#allocation4], 4
      %s406 = int_to_ptr.vmem [resolvable:$true] %s405
      %408 = dma.vmem_to_hbm [thread:$0]  %s406, 128, %s10, [#allocation5]
    $region45: #{tpu_custom_call.1} parent=1 // pred_fallthru
      _
    // Predicated region
    $region46: #{tpu_custom_call.1} parent=1 // pred_check
      _
    $region47: #{tpu_custom_call.1} parent=1 // pred_check_branch
      %410 = sbr.rel (0) target = $region49
    $region48: #{tpu_custom_call.1} parent=1 // pred_region
      %411 = dma.done [#allocation3], 128
    $region49: #{tpu_custom_call.1} parent=1 // pred_fallthru
      _
    // Predicated region
    $region50: #{tpu_custom_call.1} parent=1 // pred_check
      _
    $region51: #{tpu_custom_call.1} parent=1 // pred_check_branch
      %413 = sbr.rel (0) target = $region53
    $region52: #{tpu_custom_call.1} parent=1 // pred_region
      %414 = dma.done [#allocation5], 128
    $region53: #{tpu_custom_call.1} parent=1 // pred_fallthru
      _
    %415 = vsyncpa [#allocation3], 1
    %416 = vsyncpa [#allocation5], 1

</llo_original>
